<compile_context>
chip_gen: v7x
topology: tpu7x:2x2x1
jax: 0.10.0
libtpu: 0.0.40
codegen_flags: <defaults>
</compile_context>

<pallas_src>
import functools

import jax
import jax.numpy as jnp
from jax.experimental import pallas as pl
from jax.experimental.pallas import tpu as pltpu


def _cdiv(a, b):
    return -(-a // b)


def _bce_dice_kernel(x_ref, t_ref, bce_ref, inter_ref, pt_ref, *,
                     d_total, tile_r, steps_per_core, mask_start_block):
    """One (N, tile_r, 128) tile of the (padded) flattened inputs per step.

    Grid = (num_chunks ["parallel"], steps_per_core ["arbitrary"]).
    Outputs (resident across the reduction axis, one block per chunk):
      bce_ref, inter_ref, pt_ref : (N, 1, 128) f32 partial sums.
    """
    c = pl.program_id(0)
    i = pl.program_id(1)

    @pl.when(i == 0)
    def _init():
        bce_ref[...] = jnp.zeros_like(bce_ref)
        inter_ref[...] = jnp.zeros_like(inter_ref)
        pt_ref[...] = jnp.zeros_like(pt_ref)

    x = x_ref[...].astype(jnp.float32)          # (N, tile_r, 128)
    t = t_ref[...].astype(jnp.float32)

    # Single EUP exp per element, reused for stable BCE and the sigmoid.
    e = jnp.exp(-jnp.abs(x))
    bce_elem = jnp.maximum(x, 0.0) - x * t + jnp.log1p(e)
    # sigmoid(x): 1/(1+e) if x>=0 else e/(1+e); reciprocal on the EUP vrcp slot.
    inv = pl.reciprocal(1.0 + e, approx=True)
    p = jnp.where(x >= 0.0, inv, e * inv)
    inter_elem = p * t
    pt_elem = p + t

    # Logical row-block handled by this (chunk, step).
    row_block = c * steps_per_core + i

    def _accumulate(b, it, pt):
        # Per-step sublane (XLU) reduction into tiny resident accumulators.
        bce_ref[...] += jnp.sum(b, axis=1, keepdims=True)
        inter_ref[...] += jnp.sum(it, axis=1, keepdims=True)
        pt_ref[...] += jnp.sum(pt, axis=1, keepdims=True)

    # Fast path: every element of this block is a real (in-range) element.
    @pl.when(row_block < mask_start_block)
    def _fast():
        _accumulate(bce_elem, inter_elem, pt_elem)

    # Masked path: only for blocks that may contain padded / OOB / duplicated
    # elements (the ragged tail and the clamped duplicate block, if any).
    # jnp.where (select, not multiply) so garbage/NaN in dead lanes is discarded.
    @pl.when(row_block >= mask_start_block)
    def _masked():
        r = jax.lax.broadcasted_iota(jnp.int32, (1, tile_r, 128), 1)
        l = jax.lax.broadcasted_iota(jnp.int32, (1, tile_r, 128), 2)
        idx = (row_block * tile_r + r) * 128 + l
        valid = idx < d_total
        _accumulate(jnp.where(valid, bce_elem, 0.0),
                    jnp.where(valid, inter_elem, 0.0),
                    jnp.where(valid, pt_elem, 0.0))


def bce_dice_loss(inp, tgt, *, num_chunks=2, max_block_rows=None):
    """inp, tgt: (N, C, H, W) arrays (any float dtype). Returns scalar f32 loss.

    Feed narrow dtypes (e.g. bf16 logits/targets) directly -- the kernel streams
    inputs in their native dtype and upcasts per-tile to f32; no wrapper cast.
    `max_block_rows` only caps the tile size (used by the self-test to force
    multi-step grids on tiny inputs).
    """
    assert inp.shape == tgt.shape
    n = inp.shape[0]
    d = 1
    for s in inp.shape[1:]:
        d *= s

    # ---- lane-dense (N, rows, 128) view -------------------------------------
    rows = _cdiv(d, 128)
    d_pad = rows * 128
    x2 = jnp.reshape(inp, (n, d))
    t2 = jnp.reshape(tgt, (n, d))
    if d_pad != d:
        # Ragged D: one extra copy to make the 128-lane view possible; the pad
        # values are excluded in-kernel by the tail mask (values don't matter).
        x2 = jnp.pad(x2, ((0, 0), (0, d_pad - d)))
        t2 = jnp.pad(t2, ((0, 0), (0, d_pad - d)))
    x3 = jnp.reshape(x2, (n, rows, 128))
    t3 = jnp.reshape(t2, (n, rows, 128))

    # ---- per-generation VMEM-budgeted tile sizing ---------------------------
    try:
        vmem_cap = int(pltpu.get_tpu_info().vmem_capacity_bytes)
    except Exception:
        vmem_cap = 64 << 20                      # conservative (v7x physical)
    pipe_budget = min(vmem_cap // 4, 16 << 20)   # input double-buffer budget
    x_item = jnp.dtype(inp.dtype).itemsize
    t_item = jnp.dtype(tgt.dtype).itemsize
    # Bytes per row-of-128 per grid step: 2 inputs x 2 pipeline buffers.
    row_block_bytes = 2 * n * 128 * (x_item + t_item)
    tile_cap = max(1, pipe_budget // row_block_bytes)
    if max_block_rows is not None:
        tile_cap = min(tile_cap, max_block_rows)
    if tile_cap >= rows:
        tile_r = rows                            # full dim: always legal
    else:
        tile_r = max(8, (tile_cap // 8) * 8)     # (8,128) sublane rule
        if tile_r >= rows:
            tile_r = rows

    grid_r = _cdiv(rows, tile_r)                 # total row-blocks
    nc = max(1, min(num_chunks, grid_r))         # "parallel" chunks (v7x: 2 TCs)
    steps_per_core = _cdiv(grid_r, nc)
    # First row-block that can contain an element with index >= d.
    mask_start_block = d // (tile_r * 128)

    pipe_bytes = row_block_bytes * tile_r
    vmem_limit = int(min(vmem_cap * 3 // 4, max(pipe_bytes + (16 << 20), 32 << 20)))

    kernel = functools.partial(
        _bce_dice_kernel, d_total=d, tile_r=tile_r,
        steps_per_core=steps_per_core, mask_start_block=mask_start_block)

    def in_index(c, i):
        # Clamp the (at most one) overflow step to the last real block; its
        # contribution is zeroed by the in-kernel mask (logical index >= d).
        rb = jnp.minimum(c * steps_per_core + i, grid_r - 1)
        return (0, rb, 0)

    def out_index(c, i):
        return (c, 0, 0, 0)

    parts_shape = jax.ShapeDtypeStruct((nc, n, 1, 128), jnp.float32)
    in_spec = pl.BlockSpec((n, tile_r, 128), in_index)
    out_spec = lambda: pl.BlockSpec((None, n, 1, 128), out_index)

    bce_parts, inter_parts, pt_parts = pl.pallas_call(
        kernel,
        out_shape=(parts_shape, parts_shape, parts_shape),
        grid_spec=pltpu.PrefetchScalarGridSpec(
            num_scalar_prefetch=0,
            grid=(nc, steps_per_core),
            in_specs=[in_spec, in_spec],
            out_specs=[out_spec(), out_spec(), out_spec()],
        ),
        compiler_params=pltpu.CompilerParams(
            dimension_semantics=("parallel", "arbitrary"),
            vmem_limit_bytes=vmem_limit,
        ),
    )(x3, t3)

    # ---- tiny final combine (a few hundred f32 values) ----------------------
    smooth = 1e-05
    bce = jnp.sum(bce_parts) / (n * d)
    inter = jnp.sum(inter_parts, axis=(0, 2, 3))     # (N,)
    pt = jnp.sum(pt_parts, axis=(0, 2, 3))           # (N,)
    dice = (2.0 * inter + smooth) / (pt + smooth)
    return 0.5 * bce + (1.0 - jnp.sum(dice) / n)


def _reference(inp, tgt):
    """Plain-JAX reference mirroring the PyTorch forward."""
    x = inp.astype(jnp.float32)
    t = tgt.astype(jnp.float32)
    bce = jnp.mean(jnp.maximum(x, 0.0) - x * t + jnp.log1p(jnp.exp(-jnp.abs(x))))
    smooth = 1e-05
    n = x.shape[0]
    p = jax.nn.sigmoid(x).reshape(n, -1)
    t2 = t.reshape(n, -1)
    dice = (2.0 * jnp.sum(p * t2, axis=1) + smooth) / (
        jnp.sum(p, axis=1) + jnp.sum(t2, axis=1) + smooth
    )
    return 0.5 * bce + (1.0 - jnp.sum(dice) / n)


def _check(loss, ref):
    # approx-reciprocal sigmoid + f32 accumulation: loose-ish scalar tolerance.
    assert jnp.allclose(loss, ref, atol=2e-3, rtol=2e-3), (loss, ref)


if __name__ == "__main__":
    key = jax.random.PRNGKey(0)
    k1, k2, k3, k4, k5, k6 = jax.random.split(key, 6)

    # Primary shape implied by the module: (N, C, H, W) = (2, 4, 16, 16).
    x1 = jax.random.normal(k1, (2, 4, 16, 16), dtype=jnp.float32)
    t1 = (jax.random.uniform(k2, (2, 4, 16, 16)) > 0.5).astype(jnp.float32)
    l1 = jax.block_until_ready(bce_dice_loss(x1, t1))
    _check(l1, jax.block_until_ready(_reference(x1, t1)))

    # Multi-step reduction + the 2-chunk "parallel" axis: D=4096 -> 32 rows of
    # 128 lanes, forced into 8-row tiles -> grid (2, 2), all fast-path steps.
    x2 = jax.random.normal(k3, (2, 4, 32, 32), dtype=jnp.float32)
    t2 = (jax.random.uniform(k4, (2, 4, 32, 32)) > 0.5).astype(jnp.float32)
    l2 = jax.block_until_ready(bce_dice_loss(x2, t2, max_block_rows=8))
    _check(l2, jax.block_until_ready(_reference(x2, t2)))

    # Ragged D (2*3*32*25 -> 2400 per sample, not a multiple of 128) with an
    # odd number of row-blocks: exercises padding, tail masking, and the
    # clamped duplicate grid step.
    x3 = jax.random.normal(k5, (2, 3, 32, 25), dtype=jnp.float32)
    t3 = (jax.random.uniform(k6, (2, 3, 32, 25)) > 0.5).astype(jnp.float32)
    l3 = jax.block_until_ready(bce_dice_loss(x3, t3, max_block_rows=8))
    _check(l3, jax.block_until_ready(_reference(x3, t3)))

    print("KERNEL_OK")
</pallas_src>

<mosaic_0001>
module attributes {stable_mosaic.version = 11 : i64} {
  func.func @_bce_dice_kernel(%arg0: i32, %arg1: i32, %arg2: memref<2x8x128xf32, #tpu.memory_space<vmem>>, %arg3: memref<2x8x128xf32, #tpu.memory_space<vmem>>, %arg4: memref<1x2x1x128xf32, #tpu.memory_space<vmem>>, %arg5: memref<1x2x1x128xf32, #tpu.memory_space<vmem>>, %arg6: memref<1x2x1x128xf32, #tpu.memory_space<vmem>>) attributes {dimension_semantics = [#tpu.dimension_semantics<parallel>, #tpu.dimension_semantics<arbitrary>], iteration_bounds = array<i64: 1, 1>, scalar_prefetch = 0 : i64, scratch_operands = 0 : i64, tpu.core_type = #tpu.core_type<tc>, window_params = [{transform_indices = @transform_0, window_bounds = array<i64: 2, 8, 128>}, {transform_indices = @transform_1, window_bounds = array<i64: 2, 8, 128>}, {transform_indices = @transform_2, window_bounds = array<i64: 1, 2, 1, 128>}, {transform_indices = @transform_3, window_bounds = array<i64: 1, 2, 1, 128>}, {transform_indices = @transform_4, window_bounds = array<i64: 1, 2, 1, 128>}]} {
    %c0_i32 = arith.constant 0 : i32
    %0 = arith.cmpi eq, %arg1, %c0_i32 : i32
    %1 = arith.extui %0 : i1 to i32
    %c0_i32_0 = arith.constant 0 : i32
    %2 = arith.cmpi ne, %1, %c0_i32_0 : i32
    scf.if %2 {
      %cst_13 = arith.constant 0.000000e+00 : f32
      %32 = vector.broadcast %cst_13 : f32 to vector<2x1x128xf32>
      %c0_14 = arith.constant 0 : index
      %c0_15 = arith.constant 0 : index
      %c0_16 = arith.constant 0 : index
      %c0_17 = arith.constant 0 : index
      %33 = vector.load %arg4[%c0_14, %c0_15, %c0_16, %c0_17] : memref<1x2x1x128xf32, #tpu.memory_space<vmem>>, vector<1x2x1x128xf32>
      %34 = vector.shape_cast %33 : vector<1x2x1x128xf32> to vector<2x1x128xf32>
      %35 = vector.shape_cast %32 : vector<2x1x128xf32> to vector<1x2x1x128xf32>
      tpu.vector_store %arg4[%c0_14, %c0_15, %c0_16, %c0_17], %35 {strides = array<i32>} : memref<1x2x1x128xf32, #tpu.memory_space<vmem>>, vector<1x2x1x128xf32>,
      %cst_18 = arith.constant 0.000000e+00 : f32
      %36 = vector.broadcast %cst_18 : f32 to vector<2x1x128xf32>
      %c0_19 = arith.constant 0 : index
      %c0_20 = arith.constant 0 : index
      %c0_21 = arith.constant 0 : index
      %c0_22 = arith.constant 0 : index
      %37 = vector.load %arg5[%c0_19, %c0_20, %c0_21, %c0_22] : memref<1x2x1x128xf32, #tpu.memory_space<vmem>>, vector<1x2x1x128xf32>
      %38 = vector.shape_cast %37 : vector<1x2x1x128xf32> to vector<2x1x128xf32>
      %39 = vector.shape_cast %36 : vector<2x1x128xf32> to vector<1x2x1x128xf32>
      tpu.vector_store %arg5[%c0_19, %c0_20, %c0_21, %c0_22], %39 {strides = array<i32>} : memref<1x2x1x128xf32, #tpu.memory_space<vmem>>, vector<1x2x1x128xf32>,
      %cst_23 = arith.constant 0.000000e+00 : f32
      %40 = vector.broadcast %cst_23 : f32 to vector<2x1x128xf32>
      %c0_24 = arith.constant 0 : index
      %c0_25 = arith.constant 0 : index
      %c0_26 = arith.constant 0 : index
      %c0_27 = arith.constant 0 : index
      %41 = vector.load %arg6[%c0_24, %c0_25, %c0_26, %c0_27] : memref<1x2x1x128xf32, #tpu.memory_space<vmem>>, vector<1x2x1x128xf32>
      %42 = vector.shape_cast %41 : vector<1x2x1x128xf32> to vector<2x1x128xf32>
      %43 = vector.shape_cast %40 : vector<2x1x128xf32> to vector<1x2x1x128xf32>
      tpu.vector_store %arg6[%c0_24, %c0_25, %c0_26, %c0_27], %43 {strides = array<i32>} : memref<1x2x1x128xf32, #tpu.memory_space<vmem>>, vector<1x2x1x128xf32>,
    } else {
    }
    %c0 = arith.constant 0 : index
    %c0_1 = arith.constant 0 : index
    %c0_2 = arith.constant 0 : index
    %3 = vector.load %arg2[%c0, %c0_1, %c0_2] : memref<2x8x128xf32, #tpu.memory_space<vmem>>, vector<2x8x128xf32>
    %c0_3 = arith.constant 0 : index
    %c0_4 = arith.constant 0 : index
    %c0_5 = arith.constant 0 : index
    %4 = vector.load %arg3[%c0_3, %c0_4, %c0_5] : memref<2x8x128xf32, #tpu.memory_space<vmem>>, vector<2x8x128xf32>
    %5 = math.absf %3 : vector<2x8x128xf32>
    %cst = arith.constant 0.000000e+00 : f32
    %6 = vector.broadcast %cst : f32 to vector<2x8x128xf32>
    %7 = arith.subf %6, %5 : vector<2x8x128xf32>
    %8 = math.exp %7 : vector<2x8x128xf32>
    %cst_6 = arith.constant 0.000000e+00 : f32
    %9 = vector.broadcast %cst_6 : f32 to vector<2x8x128xf32>
    %10 = arith.maximumf %3, %9 : vector<2x8x128xf32>
    %11 = arith.mulf %3, %4 : vector<2x8x128xf32>
    %12 = arith.subf %10, %11 : vector<2x8x128xf32>
    %13 = math.log1p %8 : vector<2x8x128xf32>
    %14 = arith.addf %12, %13 : vector<2x8x128xf32>
    %cst_7 = arith.constant 1.000000e+00 : f32
    %15 = vector.broadcast %cst_7 : f32 to vector<2x8x128xf32>
    %16 = arith.addf %15, %8 : vector<2x8x128xf32>
    %17 = tpu.reciprocal %16 {approx = true} : vector<2x8x128xf32> -> vector<2x8x128xf32>
    %cst_8 = arith.constant 0.000000e+00 : f32
    %18 = vector.broadcast %cst_8 : f32 to vector<2x8x128xf32>
    %19 = arith.cmpf oge, %3, %18 : vector<2x8x128xf32>
    %20 = arith.mulf %8, %17 : vector<2x8x128xf32>
    %21 = arith.select %19, %17, %20 : vector<2x8x128xi1>, vector<2x8x128xf32>
    %22 = arith.mulf %21, %4 : vector<2x8x128xf32>
    %23 = arith.addf %21, %4 : vector<2x8x128xf32>
    %c1_i32 = arith.constant 1 : i32
    %24 = arith.muli %arg0, %c1_i32 : i32
    %25 = arith.addi %24, %arg1 : i32
    %c1_i32_9 = arith.constant 1 : i32
    %26 = arith.cmpi slt, %25, %c1_i32_9 : i32
    %27 = arith.extui %26 : i1 to i32
    %c0_i32_10 = arith.constant 0 : i32
    %28 = arith.cmpi ne, %27, %c0_i32_10 : i32
    scf.if %28 {
      %c0_13 = arith.constant 0 : index
      %c0_14 = arith.constant 0 : index
      %c0_15 = arith.constant 0 : index
      %c0_16 = arith.constant 0 : index
      %32 = vector.load %arg4[%c0_13, %c0_14, %c0_15, %c0_16] : memref<1x2x1x128xf32, #tpu.memory_space<vmem>>, vector<1x2x1x128xf32>
      %33 = vector.shape_cast %32 : vector<1x2x1x128xf32> to vector<2x1x128xf32>
      %cst_17 = arith.constant dense<0.000000e+00> : vector<2x128xf32>
      %34 = vector.multi_reduction <add>, %14, %cst_17 [1] : vector<2x8x128xf32> to vector<2x128xf32>
      %35 = vector.shape_cast %34 : vector<2x128xf32> to vector<2x1x128xf32>
      %36 = arith.addf %33, %35 : vector<2x1x128xf32>
      %c0_18 = arith.constant 0 : index
      %c0_19 = arith.constant 0 : index
      %c0_20 = arith.constant 0 : index
      %c0_21 = arith.constant 0 : index
      %37 = vector.load %arg4[%c0_18, %c0_19, %c0_20, %c0_21] : memref<1x2x1x128xf32, #tpu.memory_space<vmem>>, vector<1x2x1x128xf32>
      %38 = vector.shape_cast %37 : vector<1x2x1x128xf32> to vector<2x1x128xf32>
      %39 = vector.shape_cast %36 : vector<2x1x128xf32> to vector<1x2x1x128xf32>
      tpu.vector_store %arg4[%c0_18, %c0_19, %c0_20, %c0_21], %39 {strides = array<i32>} : memref<1x2x1x128xf32, #tpu.memory_space<vmem>>, vector<1x2x1x128xf32>,
      %c0_22 = arith.constant 0 : index
      %c0_23 = arith.constant 0 : index
      %c0_24 = arith.constant 0 : index
      %c0_25 = arith.constant 0 : index
      %40 = vector.load %arg5[%c0_22, %c0_23, %c0_24, %c0_25] : memref<1x2x1x128xf32, #tpu.memory_space<vmem>>, vector<1x2x1x128xf32>
      %41 = vector.shape_cast %40 : vector<1x2x1x128xf32> to vector<2x1x128xf32>
      %cst_26 = arith.constant dense<0.000000e+00> : vector<2x128xf32>
      %42 = vector.multi_reduction <add>, %22, %cst_26 [1] : vector<2x8x128xf32> to vector<2x128xf32>
      %43 = vector.shape_cast %42 : vector<2x128xf32> to vector<2x1x128xf32>
      %44 = arith.addf %41, %43 : vector<2x1x128xf32>
      %c0_27 = arith.constant 0 : index
      %c0_28 = arith.constant 0 : index
      %c0_29 = arith.constant 0 : index
      %c0_30 = arith.constant 0 : index
      %45 = vector.load %arg5[%c0_27, %c0_28, %c0_29, %c0_30] : memref<1x2x1x128xf32, #tpu.memory_space<vmem>>, vector<1x2x1x128xf32>
      %46 = vector.shape_cast %45 : vector<1x2x1x128xf32> to vector<2x1x128xf32>
      %47 = vector.shape_cast %44 : vector<2x1x128xf32> to vector<1x2x1x128xf32>
      tpu.vector_store %arg5[%c0_27, %c0_28, %c0_29, %c0_30], %47 {strides = array<i32>} : memref<1x2x1x128xf32, #tpu.memory_space<vmem>>, vector<1x2x1x128xf32>,
      %c0_31 = arith.constant 0 : index
      %c0_32 = arith.constant 0 : index
      %c0_33 = arith.constant 0 : index
      %c0_34 = arith.constant 0 : index
      %48 = vector.load %arg6[%c0_31, %c0_32, %c0_33, %c0_34] : memref<1x2x1x128xf32, #tpu.memory_space<vmem>>, vector<1x2x1x128xf32>
      %49 = vector.shape_cast %48 : vector<1x2x1x128xf32> to vector<2x1x128xf32>
      %cst_35 = arith.constant dense<0.000000e+00> : vector<2x128xf32>
      %50 = vector.multi_reduction <add>, %23, %cst_35 [1] : vector<2x8x128xf32> to vector<2x128xf32>
      %51 = vector.shape_cast %50 : vector<2x128xf32> to vector<2x1x128xf32>
      %52 = arith.addf %49, %51 : vector<2x1x128xf32>
      %c0_36 = arith.constant 0 : index
      %c0_37 = arith.constant 0 : index
      %c0_38 = arith.constant 0 : index
      %c0_39 = arith.constant 0 : index
      %53 = vector.load %arg6[%c0_36, %c0_37, %c0_38, %c0_39] : memref<1x2x1x128xf32, #tpu.memory_space<vmem>>, vector<1x2x1x128xf32>
      %54 = vector.shape_cast %53 : vector<1x2x1x128xf32> to vector<2x1x128xf32>
      %55 = vector.shape_cast %52 : vector<2x1x128xf32> to vector<1x2x1x128xf32>
      tpu.vector_store %arg6[%c0_36, %c0_37, %c0_38, %c0_39], %55 {strides = array<i32>} : memref<1x2x1x128xf32, #tpu.memory_space<vmem>>, vector<1x2x1x128xf32>,
    } else {
    }
    %c1_i32_11 = arith.constant 1 : i32
    %29 = arith.cmpi sge, %25, %c1_i32_11 : i32
    %30 = arith.extui %29 : i1 to i32
    %c0_i32_12 = arith.constant 0 : i32
    %31 = arith.cmpi ne, %30, %c0_i32_12 : i32
    scf.if %31 {
      %32 = tpu.iota {dimensions = array<i32: 1>} : vector<1x8x128xi32>
      %33 = tpu.iota {dimensions = array<i32: 2>} : vector<1x8x128xi32>
      %c8_i32 = arith.constant 8 : i32
      %34 = arith.muli %25, %c8_i32 : i32
      %35 = vector.broadcast %34 : i32 to vector<1x8x128xi32>
      %36 = arith.addi %35, %32 : vector<1x8x128xi32>
      %c128_i32 = arith.constant 128 : i32
      %37 = vector.broadcast %c128_i32 : i32 to vector<1x8x128xi32>
      %38 = arith.muli %36, %37 : vector<1x8x128xi32>
      %39 = arith.addi %38, %33 : vector<1x8x128xi32>
      %c1024_i32 = arith.constant 1024 : i32
      %40 = vector.broadcast %c1024_i32 : i32 to vector<1x8x128xi32>
      %41 = arith.cmpi slt, %39, %40 : vector<1x8x128xi32>
      %cst_13 = arith.constant 0.000000e+00 : f32
      %42 = vector.shape_cast %41 : vector<1x8x128xi1> to vector<1x8x128xi1>
      %43 = vector.broadcast %42 : vector<1x8x128xi1> to vector<2x8x128xi1>
      %44 = vector.broadcast %cst_13 : f32 to vector<2x8x128xf32>
      %45 = arith.select %43, %14, %44 : vector<2x8x128xi1>, vector<2x8x128xf32>
      %cst_14 = arith.constant 0.000000e+00 : f32
      %46 = vector.shape_cast %41 : vector<1x8x128xi1> to vector<1x8x128xi1>
      %47 = vector.broadcast %46 : vector<1x8x128xi1> to vector<2x8x128xi1>
      %48 = vector.broadcast %cst_14 : f32 to vector<2x8x128xf32>
      %49 = arith.select %47, %22, %48 : vector<2x8x128xi1>, vector<2x8x128xf32>
      %cst_15 = arith.constant 0.000000e+00 : f32
      %50 = vector.shape_cast %41 : vector<1x8x128xi1> to vector<1x8x128xi1>
      %51 = vector.broadcast %50 : vector<1x8x128xi1> to vector<2x8x128xi1>
      %52 = vector.broadcast %cst_15 : f32 to vector<2x8x128xf32>
      %53 = arith.select %51, %23, %52 : vector<2x8x128xi1>, vector<2x8x128xf32>
      %c0_16 = arith.constant 0 : index
      %c0_17 = arith.constant 0 : index
      %c0_18 = arith.constant 0 : index
      %c0_19 = arith.constant 0 : index
      %54 = vector.load %arg4[%c0_16, %c0_17, %c0_18, %c0_19] : memref<1x2x1x128xf32, #tpu.memory_space<vmem>>, vector<1x2x1x128xf32>
      %55 = vector.shape_cast %54 : vector<1x2x1x128xf32> to vector<2x1x128xf32>
      %cst_20 = arith.constant dense<0.000000e+00> : vector<2x128xf32>
      %56 = vector.multi_reduction <add>, %45, %cst_20 [1] : vector<2x8x128xf32> to vector<2x128xf32>
      %57 = vector.shape_cast %56 : vector<2x128xf32> to vector<2x1x128xf32>
      %58 = arith.addf %55, %57 : vector<2x1x128xf32>
      %c0_21 = arith.constant 0 : index
      %c0_22 = arith.constant 0 : index
      %c0_23 = arith.constant 0 : index
      %c0_24 = arith.constant 0 : index
      %59 = vector.load %arg4[%c0_21, %c0_22, %c0_23, %c0_24] : memref<1x2x1x128xf32, #tpu.memory_space<vmem>>, vector<1x2x1x128xf32>
      %60 = vector.shape_cast %59 : vector<1x2x1x128xf32> to vector<2x1x128xf32>
      %61 = vector.shape_cast %58 : vector<2x1x128xf32> to vector<1x2x1x128xf32>
      tpu.vector_store %arg4[%c0_21, %c0_22, %c0_23, %c0_24], %61 {strides = array<i32>} : memref<1x2x1x128xf32, #tpu.memory_space<vmem>>, vector<1x2x1x128xf32>,
      %c0_25 = arith.constant 0 : index
      %c0_26 = arith.constant 0 : index
      %c0_27 = arith.constant 0 : index
      %c0_28 = arith.constant 0 : index
      %62 = vector.load %arg5[%c0_25, %c0_26, %c0_27, %c0_28] : memref<1x2x1x128xf32, #tpu.memory_space<vmem>>, vector<1x2x1x128xf32>
      %63 = vector.shape_cast %62 : vector<1x2x1x128xf32> to vector<2x1x128xf32>
      %cst_29 = arith.constant dense<0.000000e+00> : vector<2x128xf32>
      %64 = vector.multi_reduction <add>, %49, %cst_29 [1] : vector<2x8x128xf32> to vector<2x128xf32>
      %65 = vector.shape_cast %64 : vector<2x128xf32> to vector<2x1x128xf32>
      %66 = arith.addf %63, %65 : vector<2x1x128xf32>
      %c0_30 = arith.constant 0 : index
      %c0_31 = arith.constant 0 : index
      %c0_32 = arith.constant 0 : index
      %c0_33 = arith.constant 0 : index
      %67 = vector.load %arg5[%c0_30, %c0_31, %c0_32, %c0_33] : memref<1x2x1x128xf32, #tpu.memory_space<vmem>>, vector<1x2x1x128xf32>
      %68 = vector.shape_cast %67 : vector<1x2x1x128xf32> to vector<2x1x128xf32>
      %69 = vector.shape_cast %66 : vector<2x1x128xf32> to vector<1x2x1x128xf32>
      tpu.vector_store %arg5[%c0_30, %c0_31, %c0_32, %c0_33], %69 {strides = array<i32>} : memref<1x2x1x128xf32, #tpu.memory_space<vmem>>, vector<1x2x1x128xf32>,
      %c0_34 = arith.constant 0 : index
      %c0_35 = arith.constant 0 : index
      %c0_36 = arith.constant 0 : index
      %c0_37 = arith.constant 0 : index
      %70 = vector.load %arg6[%c0_34, %c0_35, %c0_36, %c0_37] : memref<1x2x1x128xf32, #tpu.memory_space<vmem>>, vector<1x2x1x128xf32>
      %71 = vector.shape_cast %70 : vector<1x2x1x128xf32> to vector<2x1x128xf32>
      %cst_38 = arith.constant dense<0.000000e+00> : vector<2x128xf32>
      %72 = vector.multi_reduction <add>, %53, %cst_38 [1] : vector<2x8x128xf32> to vector<2x128xf32>
      %73 = vector.shape_cast %72 : vector<2x128xf32> to vector<2x1x128xf32>
      %74 = arith.addf %71, %73 : vector<2x1x128xf32>
      %c0_39 = arith.constant 0 : index
      %c0_40 = arith.constant 0 : index
      %c0_41 = arith.constant 0 : index
      %c0_42 = arith.constant 0 : index
      %75 = vector.load %arg6[%c0_39, %c0_40, %c0_41, %c0_42] : memref<1x2x1x128xf32, #tpu.memory_space<vmem>>, vector<1x2x1x128xf32>
      %76 = vector.shape_cast %75 : vector<1x2x1x128xf32> to vector<2x1x128xf32>
      %77 = vector.shape_cast %74 : vector<2x1x128xf32> to vector<1x2x1x128xf32>
      tpu.vector_store %arg6[%c0_39, %c0_40, %c0_41, %c0_42], %77 {strides = array<i32>} : memref<1x2x1x128xf32, #tpu.memory_space<vmem>>, vector<1x2x1x128xf32>,
    } else {
    }
    return
  }
  func.func @transform_0(%arg0: i32, %arg1: i32) -> (i32, i32, i32) {
    %c1_i32 = arith.constant 1 : i32
    %0 = arith.muli %arg0, %c1_i32 : i32
    %1 = arith.addi %0, %arg1 : i32
    %c0_i32 = arith.constant 0 : i32
    %2 = arith.minsi %1, %c0_i32 : i32
    %c0_i32_0 = arith.constant 0 : i32
    %c0_i32_1 = arith.constant 0 : i32
    %c0_i32_2 = arith.constant 0 : i32
    return %c0_i32_0, %2, %c0_i32_1 : i32, i32, i32
  }
  func.func @transform_1(%arg0: i32, %arg1: i32) -> (i32, i32, i32) {
    %c1_i32 = arith.constant 1 : i32
    %0 = arith.muli %arg0, %c1_i32 : i32
    %1 = arith.addi %0, %arg1 : i32
    %c0_i32 = arith.constant 0 : i32
    %2 = arith.minsi %1, %c0_i32 : i32
    %c0_i32_0 = arith.constant 0 : i32
    %c0_i32_1 = arith.constant 0 : i32
    %c0_i32_2 = arith.constant 0 : i32
    return %c0_i32_0, %2, %c0_i32_1 : i32, i32, i32
  }
  func.func @transform_2(%arg0: i32, %arg1: i32) -> (i32, i32, i32, i32) {
    %c0_i32 = arith.constant 0 : i32
    %c0_i32_0 = arith.constant 0 : i32
    %c0_i32_1 = arith.constant 0 : i32
    %c0_i32_2 = arith.constant 0 : i32
    return %arg0, %c0_i32, %c0_i32_0, %c0_i32_1 : i32, i32, i32, i32
  }
  func.func @transform_3(%arg0: i32, %arg1: i32) -> (i32, i32, i32, i32) {
    %c0_i32 = arith.constant 0 : i32
    %c0_i32_0 = arith.constant 0 : i32
    %c0_i32_1 = arith.constant 0 : i32
    %c0_i32_2 = arith.constant 0 : i32
    return %arg0, %c0_i32, %c0_i32_0, %c0_i32_1 : i32, i32, i32, i32
  }
  func.func @transform_4(%arg0: i32, %arg1: i32) -> (i32, i32, i32, i32) {
    %c0_i32 = arith.constant 0 : i32
    %c0_i32_0 = arith.constant 0 : i32
    %c0_i32_1 = arith.constant 0 : i32
    %c0_i32_2 = arith.constant 0 : i32
    return %arg0, %c0_i32, %c0_i32_0, %c0_i32_1 : i32, i32, i32, i32
  }
}

</mosaic_0001>

<llo_original>
// kernel: tpu_custom_call.1
$region0: #{tpu_custom_call.1}
  #allocation0 [shape = 'u32[]', space=smem, size = 0x4, offset = 0x4, fixed_abs, tag = 'smem constant byte address 0x4 - core index']
  #allocation1 [shape = 'u32[144,128]{1,0:T(1,128)}', space=vmem, size = 0x12000, scoped, tag = 'internal scratch']
  %s0 = inlined_call_operand.hbm [shape: f32[2,8,128], index: 0, kind: input, shape index: {}]
  %s1 = inlined_call_operand.hbm [shape: f32[2,8,128], index: 1, kind: input, shape index: {}]
  %s2 = inlined_call_operand.hbm [shape: f32[1,2,1,128], index: 2, kind: output, shape index: {0}]
  %s3 = inlined_call_operand.hbm [shape: f32[1,2,1,128], index: 3, kind: output, shape index: {1}]
  %s4 = inlined_call_operand.hbm [shape: f32[1,2,1,128], index: 4, kind: output, shape index: {2}]
  %5 = xla_tuple %s2, %s3, %s4
  %s6 = sld [smem:[#allocation0]]
  $region54: #{tpu_custom_call.1} parent=0
    _
  %s8 = ssub.s32 1, %s6
  %s9 = scalar_select 0, %s8, %s6
  $region1: #{tpu_custom_call.1} parent=0
    #allocation2 [shape = 'u8[8192]{0}', space=vmem, size = 0x2000, scoped, tag = 'input window, operand 0, single buffered']
    #allocation3 [shape = 's32[1]{0}', space=sflag, size = 0x4, scoped, tag = 'scoped memory for tpu_custom_call.1']
    #allocation4 [shape = 's32[1]{0}', space=sflag, size = 0x4, scoped, tag = 'scoped memory for tpu_custom_call.1']
    #allocation5 [shape = 'u8[8192]{0}', space=vmem, size = 0x2000, scoped, tag = 'input window, operand 1, single buffered']
    #allocation6 [shape = 's32[1]{0}', space=sflag, size = 0x4, scoped, tag = 'scoped memory for tpu_custom_call.1']
    #allocation7 [shape = 'u8[1024]{0}', space=vmem, size = 0x400, scoped, tag = 'output window, operand 0, single buffered']
    #allocation8 [shape = 'u8[1024]{0}', space=vmem, size = 0x400, scoped, tag = 'output window, operand 1, single buffered']
    #allocation9 [shape = 's32[1]{0}', space=sflag, size = 0x4, scoped, tag = 'scoped memory for tpu_custom_call.1']
    #allocation10 [shape = 'u8[1024]{0}', space=vmem, size = 0x400, scoped, tag = 'output window, operand 2, single buffered']
    %10 = vsyncpa [#allocation3], 0
    %11 = vsyncpa [#allocation6], 0
    %12 = vsyncpa [#allocation4], 0
    %13 = vsyncpa [#allocation9], 0
    // Predicated region
    $region2: #{tpu_custom_call.1} parent=1 // pred_check
      _
    $region3: #{tpu_custom_call.1} parent=1 // pred_check_branch
      %15 = sbr.rel (0) target = $region5
    $region4: #{tpu_custom_call.1} parent=1 // pred_region
      %s16 = sadd.s32 0, 0
      %p17 = scmp.lt.s32.totalorder %s16, 0
      %s18 = scalar_select %p17, %s16, 0
      %s20 = ssub.s32 256, 256
      %21 = vsyncadd [#allocation3], %s20
      %s22 = smul.addr %s18, 128
      %s23 = scalar_lea.hbm %s0, %s22
      %s24 = sshll.u32 [#allocation2], 4
      %s25 = int_to_ptr.vmem [resolvable:$true] %s24
      %30 = dma.hbm_to_vmem [thread:$0]  %s23, 256, %s25, [#allocation3], 128, 128, 8
    $region5: #{tpu_custom_call.1} parent=1 // pred_fallthru
      _
    // Predicated region
    $region6: #{tpu_custom_call.1} parent=1 // pred_check
      _
    $region7: #{tpu_custom_call.1} parent=1 // pred_check_branch
      %32 = sbr.rel (0) target = $region9
    $region8: #{tpu_custom_call.1} parent=1 // pred_region
      %s33 = sadd.s32 0, 0
      %p34 = scmp.lt.s32.totalorder %s33, 0
      %s35 = scalar_select %p34, %s33, 0
      %s37 = ssub.s32 256, 256
      %38 = vsyncadd [#allocation6], %s37
      %s39 = smul.addr %s35, 128
      %s40 = scalar_lea.hbm %s1, %s39
      %s41 = sshll.u32 [#allocation5], 4
      %s42 = int_to_ptr.vmem [resolvable:$true] %s41
      %47 = dma.hbm_to_vmem [thread:$0]  %s40, 256, %s42, [#allocation6], 128, 128, 8
    $region9: #{tpu_custom_call.1} parent=1 // pred_fallthru
      _
    // Predicated region
    $region10: #{tpu_custom_call.1} parent=1 // pred_check
      _
    $region11: #{tpu_custom_call.1} parent=1 // pred_check_branch
      %49 = sbr.rel (0) target = $region13
    $region12: #{tpu_custom_call.1} parent=1 // pred_region
      %50 = dma.done [#allocation3], 256
    $region13: #{tpu_custom_call.1} parent=1 // pred_fallthru
      _
    // Predicated region
    $region14: #{tpu_custom_call.1} parent=1 // pred_check
      _
    $region15: #{tpu_custom_call.1} parent=1 // pred_check_branch
      %52 = sbr.rel (0) target = $region17
    $region16: #{tpu_custom_call.1} parent=1 // pred_region
      %53 = dma.done [#allocation6], 256
    $region17: #{tpu_custom_call.1} parent=1 // pred_fallthru
      _
    %s54 = sadd.s32 0, 0
    %p55 = scmp.lt.s32.totalorder %s54, 0
    %s56 = scalar_select %p55, %s54, 0
    %s57 = sadd.s32 0, 0
    %p58 = scmp.lt.s32.totalorder %s57, 0
    %s59 = scalar_select %p58, %s57, 0
    %p60 = scmp.eq.s32.totalorder 0, 0
    // Predicated region
    $region18: #{tpu_custom_call.1} parent=1 // pred_check
      %p61 = pneg %p60
    $region19: #{tpu_custom_call.1} parent=1 // pred_check_branch
      %63 = sbr.rel (%p61) target = $region21
    $region20: #{tpu_custom_call.1} parent=1 // pred_region
      %64 = vst [vmem:[#allocation7] sm:$0x1] 0.0
      %65 = vst [vmem:[#allocation7 + $0x1] sm:$0x1] 0.0
      %66 = vst [vmem:[#allocation8] sm:$0x1] 0.0
      %67 = vst [vmem:[#allocation8 + $0x1] sm:$0x1] 0.0
      %68 = vst [vmem:[#allocation10] sm:$0x1] 0.0
      %69 = vst [vmem:[#allocation10 + $0x1] sm:$0x1] 0.0
    $region21: #{tpu_custom_call.1} parent=1 // pred_fallthru
      _
    %v70 = vld [vmem:[#allocation2] sm:$0xff]
    %v71 = vld [vmem:[#allocation2 + $0x8] sm:$0xff]
    %v72 = vld [vmem:[#allocation5] sm:$0xff]
    %v73 = vld [vmem:[#allocation5 + $0x8] sm:$0xff]
    %v74 = vand.u32 2147483647, %v70
    %v75 = vand.u32 2147483647, %v71
    %v76 = vsub.f32 0.0, %v74
    %v77 = vsub.f32 0.0, %v75
    %v78 = vmul.f32 %v76, 1.442695
    %v79 = vpow.pop %v78
    %v80 = vmul.f32 %v77, 1.442695
    %v81 = vpow.pop %v80
    %v82 = vmax.f32 %v70, 0.0
    %v83 = vmax.f32 %v71, 0.0
    %v84 = vmul.f32 %v70, %v72
    %v85 = vmul.f32 %v71, %v73
    %v86 = vsub.f32 %v82, %v84
    %v87 = vsub.f32 %v83, %v85
    %v88 = vadd.f32 %v79, 1.0
    %v89 = vlog2.pop %v88
    %v90 = vmul.f32 %v89, 0.6931472
    %v91 = vmul.f32 -0.5, %v79
    %v92 = vadd.f32 %v91, 1.0
    %v93 = vmul.f32 %v92, %v79
    %v94 = vand.u32 2147483647, %v79
    %vm95 = vcmp.lt.f32.partialorder %v94, 0.0004427343
    %v96 = vsel %vm95, %v93, %v90
    %v97 = vadd.f32 %v81, 1.0
    %v98 = vlog2.pop %v97
    %v99 = vmul.f32 %v98, 0.6931472
    %v100 = vmul.f32 -0.5, %v81
    %v101 = vadd.f32 %v100, 1.0
    %v102 = vmul.f32 %v101, %v81
    %v103 = vand.u32 2147483647, %v81
    %vm104 = vcmp.lt.f32.partialorder %v103, 0.0004427343
    %v105 = vsel %vm104, %v102, %v99
    %v106 = vadd.f32 %v86, %v96
    %v107 = vadd.f32 %v87, %v105
    %v108 = vadd.f32 %v79, 1.0
    %v109 = vadd.f32 %v81, 1.0
    %v110 = vrcp.pop %v108
    %v111 = vrcp.pop %v109
    %vm112 = vcmp.ge.f32.partialorder %v70, 0.0
    %vm113 = vcmp.ge.f32.partialorder %v71, 0.0
    %v114 = vmul.f32 %v79, %v110
    %v115 = vmul.f32 %v81, %v111
    %v116 = vsel %vm112, %v110, %v114
    %v117 = vsel %vm113, %v111, %v115
    %v118 = vmul.f32 %v116, %v72
    %v119 = vmul.f32 %v117, %v73
    %v120 = vadd.f32 %v116, %v72
    %v121 = vadd.f32 %v117, %v73
    %s122 = sadd.s32 0, 0
    %p123 = scmp.lt.s32.totalorder %s122, 1
    // Predicated region
    $region22: #{tpu_custom_call.1} parent=1 // pred_check
      %p124 = pneg %p123
    $region23: #{tpu_custom_call.1} parent=1 // pred_check_branch
      %126 = sbr.rel (%p124) target = $region25
    $region24: #{tpu_custom_call.1} parent=1 // pred_region
      %v127 = vld [vmem:[#allocation7] sm:$0x1]
      %v128 = vld [vmem:[#allocation7 + $0x1] sm:$0x1]
      %v129 = vrot.slane %v106, 4
      %v130 = vadd.f32 %v106, %v129
      %v131 = vrot.slane %v130, 2
      %v132 = vadd.f32 %v130, %v131
      %v133 = vrot.slane %v132, 1
      %v134 = vadd.f32 %v132, %v133
      %v135 = vrot.slane %v107, 4
      %v136 = vadd.f32 %v107, %v135
      %v137 = vrot.slane %v136, 2
      %v138 = vadd.f32 %v136, %v137
      %v139 = vrot.slane %v138, 1
      %v140 = vadd.f32 %v138, %v139
      %v141 = vadd.f32 %v127, %v134
      %v142 = vadd.f32 %v128, %v140
      %143 = vst [vmem:[#allocation7] sm:$0x1] %v141
      %144 = vst [vmem:[#allocation7 + $0x1] sm:$0x1] %v142
      %v145 = vld [vmem:[#allocation8] sm:$0x1]
      %v146 = vld [vmem:[#allocation8 + $0x1] sm:$0x1]
      %v147 = vrot.slane %v118, 4
      %v148 = vadd.f32 %v118, %v147
      %v149 = vrot.slane %v148, 2
      %v150 = vadd.f32 %v148, %v149
      %v151 = vrot.slane %v150, 1
      %v152 = vadd.f32 %v150, %v151
      %v153 = vrot.slane %v119, 4
      %v154 = vadd.f32 %v119, %v153
      %v155 = vrot.slane %v154, 2
      %v156 = vadd.f32 %v154, %v155
      %v157 = vrot.slane %v156, 1
      %v158 = vadd.f32 %v156, %v157
      %v159 = vadd.f32 %v145, %v152
      %v160 = vadd.f32 %v146, %v158
      %161 = vst [vmem:[#allocation8] sm:$0x1] %v159
      %162 = vst [vmem:[#allocation8 + $0x1] sm:$0x1] %v160
      %v163 = vld [vmem:[#allocation10] sm:$0x1]
      %v164 = vld [vmem:[#allocation10 + $0x1] sm:$0x1]
      %v165 = vrot.slane %v120, 4
      %v166 = vadd.f32 %v120, %v165
      %v167 = vrot.slane %v166, 2
      %v168 = vadd.f32 %v166, %v167
      %v169 = vrot.slane %v168, 1
      %v170 = vadd.f32 %v168, %v169
      %v171 = vrot.slane %v121, 4
      %v172 = vadd.f32 %v121, %v171
      %v173 = vrot.slane %v172, 2
      %v174 = vadd.f32 %v172, %v173
      %v175 = vrot.slane %v174, 1
      %v176 = vadd.f32 %v174, %v175
      %v177 = vadd.f32 %v163, %v170
      %v178 = vadd.f32 %v164, %v176
      %179 = vst [vmem:[#allocation10] sm:$0x1] %v177
      %180 = vst [vmem:[#allocation10 + $0x1] sm:$0x1] %v178
    $region25: #{tpu_custom_call.1} parent=1 // pred_fallthru
      _
    %p181 = scmp.ge.s32.totalorder %s122, 1
    // Predicated region
    $region26: #{tpu_custom_call.1} parent=1 // pred_check
      %p182 = pneg %p181
    $region27: #{tpu_custom_call.1} parent=1 // pred_check_branch
      %184 = sbr.rel (%p182) target = $region29
    $region28: #{tpu_custom_call.1} parent=1 // pred_region
      %v185 = vlaneseq
      %v186 = vshrl.u32 %v185, 7
      %v187 = vlaneseq
      %v188 = vand.u32 %v187, 127
      %s189 = smul.u32 %s122, 8
      %v190 = vstv %s189
      %v191 = vadd.s32 %v190, %v186
      %v192 = vmul.u32 %v191, 128
      %v193 = vadd.s32 %v192, %v188
      %vm194 = vcmp.lt.s32.totalorder %v193, 1024
      %v195 = vsel %vm194, 1, 0
      %vm196 = vcmp.eq.s32.totalorder %v195, 1
      %v197 = vsel %vm196, %v106, 0.0
      %v198 = vsel %vm196, %v107, 0.0
      %v199 = vsel %vm196, %v118, 0.0
      %v200 = vsel %vm196, %v119, 0.0
      %v201 = vsel %vm196, %v120, 0.0
      %v202 = vsel %vm196, %v121, 0.0
      %v203 = vld [vmem:[#allocation7] sm:$0x1]
      %v204 = vld [vmem:[#allocation7 + $0x1] sm:$0x1]
      %v205 = vrot.slane %v197, 4
      %v206 = vadd.f32 %v197, %v205
      %v207 = vrot.slane %v206, 2
      %v208 = vadd.f32 %v206, %v207
      %v209 = vrot.slane %v208, 1
      %v210 = vadd.f32 %v208, %v209
      %v211 = vrot.slane %v198, 4
      %v212 = vadd.f32 %v198, %v211
      %v213 = vrot.slane %v212, 2
      %v214 = vadd.f32 %v212, %v213
      %v215 = vrot.slane %v214, 1
      %v216 = vadd.f32 %v214, %v215
      %v217 = vadd.f32 %v203, %v210
      %v218 = vadd.f32 %v204, %v216
      %219 = vst [vmem:[#allocation7] sm:$0x1] %v217
      %220 = vst [vmem:[#allocation7 + $0x1] sm:$0x1] %v218
      %v221 = vld [vmem:[#allocation8] sm:$0x1]
      %v222 = vld [vmem:[#allocation8 + $0x1] sm:$0x1]
      %v223 = vrot.slane %v199, 4
      %v224 = vadd.f32 %v199, %v223
      %v225 = vrot.slane %v224, 2
      %v226 = vadd.f32 %v224, %v225
      %v227 = vrot.slane %v226, 1
      %v228 = vadd.f32 %v226, %v227
      %v229 = vrot.slane %v200, 4
      %v230 = vadd.f32 %v200, %v229
      %v231 = vrot.slane %v230, 2
      %v232 = vadd.f32 %v230, %v231
      %v233 = vrot.slane %v232, 1
      %v234 = vadd.f32 %v232, %v233
      %v235 = vadd.f32 %v221, %v228
      %v236 = vadd.f32 %v222, %v234
      %237 = vst [vmem:[#allocation8] sm:$0x1] %v235
      %238 = vst [vmem:[#allocation8 + $0x1] sm:$0x1] %v236
      %v239 = vld [vmem:[#allocation10] sm:$0x1]
      %v240 = vld [vmem:[#allocation10 + $0x1] sm:$0x1]
      %v241 = vrot.slane %v201, 4
      %v242 = vadd.f32 %v201, %v241
      %v243 = vrot.slane %v242, 2
      %v244 = vadd.f32 %v242, %v243
      %v245 = vrot.slane %v244, 1
      %v246 = vadd.f32 %v244, %v245
      %v247 = vrot.slane %v202, 4
      %v248 = vadd.f32 %v202, %v247
      %v249 = vrot.slane %v248, 2
      %v250 = vadd.f32 %v248, %v249
      %v251 = vrot.slane %v250, 1
      %v252 = vadd.f32 %v250, %v251
      %v253 = vadd.f32 %v239, %v246
      %v254 = vadd.f32 %v240, %v252
      %255 = vst [vmem:[#allocation10] sm:$0x1] %v253
      %256 = vst [vmem:[#allocation10 + $0x1] sm:$0x1] %v254
    $region29: #{tpu_custom_call.1} parent=1 // pred_fallthru
      _
    // Predicated region
    $region30: #{tpu_custom_call.1} parent=1 // pred_check
      _
    $region31: #{tpu_custom_call.1} parent=1 // pred_check_branch
      %258 = sbr.rel (0) target = $region33
    $region32: #{tpu_custom_call.1} parent=1 // pred_region
      %s260 = ssub.s32 32, 32
      %261 = vsyncadd [#allocation4], %s260
      %s262 = sshll.u32 [#allocation7], 4
      %s263 = int_to_ptr.vmem [resolvable:$true] %s262
      %268 = dma.vmem_to_hbm [thread:$0]  %s263, 32, %s2, [#allocation4], 16, 16, 1
    $region33: #{tpu_custom_call.1} parent=1 // pred_fallthru
      _
    // Predicated region
    $region34: #{tpu_custom_call.1} parent=1 // pred_check
      _
    $region35: #{tpu_custom_call.1} parent=1 // pred_check_branch
      %270 = sbr.rel (0) target = $region37
    $region36: #{tpu_custom_call.1} parent=1 // pred_region
      %s272 = ssub.s32 32, 32
      %273 = vsyncadd [#allocation9], %s272
      %s274 = sshll.u32 [#allocation8], 4
      %s275 = int_to_ptr.vmem [resolvable:$true] %s274
      %280 = dma.vmem_to_hbm [thread:$0]  %s275, 32, %s3, [#allocation9], 16, 16, 1
    $region37: #{tpu_custom_call.1} parent=1 // pred_fallthru
      _
    // Predicated region
    $region38: #{tpu_custom_call.1} parent=1 // pred_check
      _
    $region39: #{tpu_custom_call.1} parent=1 // pred_check_branch
      %282 = sbr.rel (0) target = $region41
    $region40: #{tpu_custom_call.1} parent=1 // pred_region
      %s284 = ssub.s32 32, 32
      %285 = vsyncadd [#allocation9], %s284
      %s286 = sshll.u32 [#allocation10], 4
      %s287 = int_to_ptr.vmem [resolvable:$true] %s286
      %292 = dma.vmem_to_hbm [thread:$0]  %s287, 32, %s4, [#allocation9], 16, 16, 1
    $region41: #{tpu_custom_call.1} parent=1 // pred_fallthru
      _
    // Predicated region
    $region42: #{tpu_custom_call.1} parent=1 // pred_check
      _
    $region43: #{tpu_custom_call.1} parent=1 // pred_check_branch
      %294 = sbr.rel (0) target = $region45
    $region44: #{tpu_custom_call.1} parent=1 // pred_region
      %295 = dma.done [#allocation4], 32
    $region45: #{tpu_custom_call.1} parent=1 // pred_fallthru
      _
    // Predicated region
    $region46: #{tpu_custom_call.1} parent=1 // pred_check
      _
    $region47: #{tpu_custom_call.1} parent=1 // pred_check_branch
      %297 = sbr.rel (0) target = $region49
    $region48: #{tpu_custom_call.1} parent=1 // pred_region
      %298 = dma.done [#allocation9], 32
    $region49: #{tpu_custom_call.1} parent=1 // pred_fallthru
      _
    // Predicated region
    $region50: #{tpu_custom_call.1} parent=1 // pred_check
      _
    $region51: #{tpu_custom_call.1} parent=1 // pred_check_branch
      %300 = sbr.rel (0) target = $region53
    $region52: #{tpu_custom_call.1} parent=1 // pred_region
      %301 = dma.done [#allocation9], 32
    $region53: #{tpu_custom_call.1} parent=1 // pred_fallthru
      _
    %302 = vsyncpa [#allocation3], 1
    %303 = vsyncpa [#allocation6], 1
    %304 = vsyncpa [#allocation4], 1
    %305 = vsyncpa [#allocation9], 1

</llo_original>
